<compile_context>
chip_gen: v7x
topology: tpu7x:2x2x1
jax: 0.10.0
libtpu: 0.0.40
codegen_flags: <defaults>
</compile_context>

<pallas_src>
import jax
import jax.numpy as jnp
from jax.experimental import pallas as pl
from jax.experimental.pallas import tpu as pltpu


def _content_loss_kernel(x_ref, t_ref, loss_ref, acc_ref):
    """Accumulate sum of squared differences for one (tile_rows, 128) tile.

    acc_ref is an (8, 128) f32 VMEM vector accumulator; the expensive scalar
    reduce runs only once per parallel split, in the epilogue.
    """
    i = pl.program_id(1)

    @pl.when(i == 0)
    def _():
        acc_ref[...] = jnp.zeros_like(acc_ref)

    # f32 diff/accumulate (required on v5e for bf16 inputs; no-op for f32).
    d = x_ref[...].astype(jnp.float32) - t_ref[...].astype(jnp.float32)
    sq = d * d
    tr = sq.shape[0]
    # Fold sublane groups of 8 into the (8, 128) accumulator: pure VPU adds.
    acc_ref[...] += jnp.sum(sq.reshape(tr // 8, 8, 128), axis=0)

    @pl.when(i == pl.num_programs(1) - 1)
    def _():
        # Partial sum-of-squared-errors for this parallel split (one XLU
        # reduce per split, not per step).
        loss_ref[...] = jnp.sum(acc_ref[...]).reshape(1, 1)


def content_loss(x, target, *, tile_rows=2048, num_parallel=2):
    """ContentLoss.forward: returns (input, mse_loss(input, target)).

    The pass-through is returned directly from the wrapper (no kernel copy);
    the kernel only reads x / target and emits per-split partial SSE sums.
    """
    assert x.shape == target.shape, "input / target shape mismatch"
    n_total = x.size
    lanes = 128
    rows = pl.cdiv(n_total, lanes)

    if rows <= tile_rows:
        # Tiny input: one block, no multi-step pipeline overhead.
        tile_rows_eff = max(8, ((rows + 7) // 8) * 8)
        num_par = 1
        steps = 1
    else:
        tile_rows_eff = tile_rows
        num_par = num_parallel
        steps = pl.cdiv(rows, num_par * tile_rows_eff)

    rows_padded = num_par * steps * tile_rows_eff
    pad = rows_padded * lanes - n_total

    x_flat = jnp.ravel(x)
    t_flat = jnp.ravel(target)
    if pad:
        # Pad both operands identically -> pad region contributes 0 to SSE.
        x_flat = jnp.pad(x_flat, (0, pad))
        t_flat = jnp.pad(t_flat, (0, pad))
    x2 = x_flat.reshape(rows_padded, lanes)
    t2 = t_flat.reshape(rows_padded, lanes)

    partials = pl.pallas_call(
        _content_loss_kernel,
        out_shape=jax.ShapeDtypeStruct((num_par, 1), jnp.float32),
        grid_spec=pltpu.PrefetchScalarGridSpec(
            num_scalar_prefetch=0,
            grid=(num_par, steps),
            in_specs=[
                pl.BlockSpec((tile_rows_eff, lanes),
                             lambda p, i: (p * steps + i, 0)),
                pl.BlockSpec((tile_rows_eff, lanes),
                             lambda p, i: (p * steps + i, 0)),
            ],
            out_specs=pl.BlockSpec((1, 1), lambda p, i: (p, 0)),
            scratch_shapes=[pltpu.VMEM((8, lanes), jnp.float32)],
        ),
        compiler_params=pltpu.CompilerParams(
            dimension_semantics=("parallel", "arbitrary")),
    )(x2, t2)

    loss = jnp.sum(partials) / jnp.float32(n_total)
    # forward(input) returns its input unchanged -> no HBM copy needed.
    return x, loss


if __name__ == "__main__":
    key = jax.random.PRNGKey(0)
    k_in, k_tgt, k_in2, k_tgt2 = jax.random.split(key, 4)

    # NCHW feature map, small shapes consistent with the module.
    x = jax.random.normal(k_in, (2, 4, 16, 16), dtype=jnp.float32)
    target = jax.random.normal(k_tgt, (2, 4, 16, 16), dtype=jnp.float32)

    out, loss = content_loss(x, target)
    out, loss = jax.block_until_ready((out, loss))

    ref_loss = jnp.mean((x - target) ** 2)
    assert jnp.allclose(out, x), "pass-through output mismatch"
    assert jnp.allclose(loss, ref_loss, rtol=1e-5, atol=1e-6), "loss mismatch"

    # Also exercise the multi-step / padded / parallel-split path with a
    # shape that does not divide tile_rows * 128.
    x_big = jax.random.normal(k_in2, (4, 64, 33, 37), dtype=jnp.float32)
    t_big = jax.random.normal(k_tgt2, (4, 64, 33, 37), dtype=jnp.float32)
    out_big, loss_big = jax.block_until_ready(content_loss(x_big, t_big))
    ref_big = jnp.mean((x_big - t_big) ** 2)
    assert jnp.allclose(loss_big, ref_big, rtol=1e-5, atol=1e-6), \
        "loss mismatch (padded / multi-step path)"

    print("KERNEL_OK")
</pallas_src>

<mosaic_0001>
module attributes {stable_mosaic.version = 11 : i64} {
  func.func @_content_loss_kernel(%arg0: i32, %arg1: i32, %arg2: memref<16x128xf32, #tpu.memory_space<vmem>>, %arg3: memref<16x128xf32, #tpu.memory_space<vmem>>, %arg4: memref<1x1xf32, #tpu.memory_space<vmem>>, %arg5: memref<8x128xf32, #tpu.memory_space<vmem>>) attributes {dimension_semantics = [#tpu.dimension_semantics<parallel>, #tpu.dimension_semantics<arbitrary>], iteration_bounds = array<i64: 1, 1>, scalar_prefetch = 0 : i64, scratch_operands = 1 : i64, tpu.core_type = #tpu.core_type<tc>, window_params = [{transform_indices = @transform_0, window_bounds = array<i64: 16, 128>}, {transform_indices = @transform_1, window_bounds = array<i64: 16, 128>}, {transform_indices = @transform_2, window_bounds = array<i64: 1, 1>}]} {
    %c0_i32 = arith.constant 0 : i32
    %0 = arith.cmpi eq, %arg1, %c0_i32 : i32
    %1 = arith.extui %0 : i1 to i32
    %c0_i32_0 = arith.constant 0 : i32
    %2 = arith.cmpi ne, %1, %c0_i32_0 : i32
    scf.if %2 {
      %cst_10 = arith.constant 0.000000e+00 : f32
      %15 = vector.broadcast %cst_10 : f32 to vector<8x128xf32>
      %c0_11 = arith.constant 0 : index
      %c0_12 = arith.constant 0 : index
      %16 = vector.load %arg5[%c0_11, %c0_12] : memref<8x128xf32, #tpu.memory_space<vmem>>, vector<8x128xf32>
      tpu.vector_store %arg5[%c0_11, %c0_12], %15 {strides = array<i32>} : memref<8x128xf32, #tpu.memory_space<vmem>>, vector<8x128xf32>,
    } else {
    }
    %c0 = arith.constant 0 : index
    %c0_1 = arith.constant 0 : index
    %3 = vector.load %arg2[%c0, %c0_1] : memref<16x128xf32, #tpu.memory_space<vmem>>, vector<16x128xf32>
    %c0_2 = arith.constant 0 : index
    %c0_3 = arith.constant 0 : index
    %4 = vector.load %arg3[%c0_2, %c0_3] : memref<16x128xf32, #tpu.memory_space<vmem>>, vector<16x128xf32>
    %5 = arith.subf %3, %4 : vector<16x128xf32>
    %6 = arith.mulf %5, %5 : vector<16x128xf32>
    %c0_4 = arith.constant 0 : index
    %c0_5 = arith.constant 0 : index
    %7 = vector.load %arg5[%c0_4, %c0_5] : memref<8x128xf32, #tpu.memory_space<vmem>>, vector<8x128xf32>
    %8 = vector.shape_cast %6 : vector<16x128xf32> to vector<2x8x128xf32>
    %cst = arith.constant dense<0.000000e+00> : vector<8x128xf32>
    %9 = vector.multi_reduction <add>, %8, %cst [0] : vector<2x8x128xf32> to vector<8x128xf32>
    %10 = arith.addf %7, %9 : vector<8x128xf32>
    %c0_6 = arith.constant 0 : index
    %c0_7 = arith.constant 0 : index
    %11 = vector.load %arg5[%c0_6, %c0_7] : memref<8x128xf32, #tpu.memory_space<vmem>>, vector<8x128xf32>
    tpu.vector_store %arg5[%c0_6, %c0_7], %10 {strides = array<i32>} : memref<8x128xf32, #tpu.memory_space<vmem>>, vector<8x128xf32>,
    %c0_i32_8 = arith.constant 0 : i32
    %12 = arith.cmpi eq, %arg1, %c0_i32_8 : i32
    %13 = arith.extui %12 : i1 to i32
    %c0_i32_9 = arith.constant 0 : i32
    %14 = arith.cmpi ne, %13, %c0_i32_9 : i32
    scf.if %14 {
      %c0_10 = arith.constant 0 : index
      %c0_11 = arith.constant 0 : index
      %15 = vector.load %arg5[%c0_10, %c0_11] : memref<8x128xf32, #tpu.memory_space<vmem>>, vector<8x128xf32>
      %16 = vector.shape_cast %15 : vector<8x128xf32> to vector<1x8x128xf32>
      %cst_12 = arith.constant dense<0.000000e+00> : vector<1xf32>
      %17 = vector.multi_reduction <add>, %16, %cst_12 [1, 2] : vector<1x8x128xf32> to vector<1xf32>
      %18 = vector.shape_cast %17 : vector<1xf32> to vector<1x1x1xf32>
      %19 = vector.extract %18[0, 0, 0] : f32 from vector<1x1x1xf32>
      %20 = vector.broadcast %19 : f32 to vector<1x1xf32>
      %c0_13 = arith.constant 0 : index
      %c0_14 = arith.constant 0 : index
      %21 = vector.load %arg4[%c0_13, %c0_14] : memref<1x1xf32, #tpu.memory_space<vmem>>, vector<1x1xf32>
      tpu.vector_store %arg4[%c0_13, %c0_14], %20 {strides = array<i32>} : memref<1x1xf32, #tpu.memory_space<vmem>>, vector<1x1xf32>,
    } else {
    }
    return
  }
  func.func @transform_0(%arg0: i32, %arg1: i32) -> (i32, i32) {
    %c1_i32 = arith.constant 1 : i32
    %0 = arith.muli %arg0, %c1_i32 : i32
    %1 = arith.addi %0, %arg1 : i32
    %c0_i32 = arith.constant 0 : i32
    %c0_i32_0 = arith.constant 0 : i32
    return %1, %c0_i32 : i32, i32
  }
  func.func @transform_1(%arg0: i32, %arg1: i32) -> (i32, i32) {
    %c1_i32 = arith.constant 1 : i32
    %0 = arith.muli %arg0, %c1_i32 : i32
    %1 = arith.addi %0, %arg1 : i32
    %c0_i32 = arith.constant 0 : i32
    %c0_i32_0 = arith.constant 0 : i32
    return %1, %c0_i32 : i32, i32
  }
  func.func @transform_2(%arg0: i32, %arg1: i32) -> (i32, i32) {
    %c0_i32 = arith.constant 0 : i32
    %c0_i32_0 = arith.constant 0 : i32
    return %arg0, %c0_i32 : i32, i32
  }
}

</mosaic_0001>

<llo_original>
// kernel: tpu_custom_call.1
$region0: #{tpu_custom_call.1}
  #allocation0 [shape = 'u32[]', space=smem, size = 0x4, offset = 0x4, fixed_abs, tag = 'smem constant byte address 0x4 - core index']
  #allocation1 [shape = 'u32[144,128]{1,0:T(1,128)}', space=vmem, size = 0x12000, scoped, tag = 'internal scratch']
  #allocation2 [shape = 'f32[8,128]{1,0:T(8,128)}', space=vmem, size = 0x1000, scoped, tag = 'scratch operand']
  %s0 = inlined_call_operand.hbm [shape: f32[16,128], index: 0, kind: input, shape index: {}]
  %s1 = inlined_call_operand.hbm [shape: f32[16,128], index: 1, kind: input, shape index: {}]
  %s2 = inlined_call_operand.hbm [shape: f32[1,1], index: 2, kind: output, shape index: {}]
  %s3 = sld [smem:[#allocation0]]
  $region34: #{tpu_custom_call.1} parent=0
    _
  %s5 = ssub.s32 1, %s3
  %s6 = scalar_select 0, %s5, %s3
  $region1: #{tpu_custom_call.1} parent=0
    #allocation3 [shape = 'u8[8192]{0}', space=vmem, size = 0x2000, scoped, tag = 'input window, operand 0, single buffered']
    #allocation4 [shape = 's32[1]{0}', space=sflag, size = 0x4, scoped, tag = 'scoped memory for tpu_custom_call.1']
    #allocation5 [shape = 's32[1]{0}', space=sflag, size = 0x4, scoped, tag = 'scoped memory for tpu_custom_call.1']
    #allocation6 [shape = 'u8[8192]{0}', space=vmem, size = 0x2000, scoped, tag = 'input window, operand 1, single buffered']
    #allocation7 [shape = 's32[1]{0}', space=sflag, size = 0x4, scoped, tag = 'scoped memory for tpu_custom_call.1']
    #allocation8 [shape = 'u8[512]{0}', space=vmem, size = 0x400, scoped, tag = 'output window, operand 0, single buffered']
    %7 = vsyncpa [#allocation4], 0
    %8 = vsyncpa [#allocation7], 0
    %9 = vsyncpa [#allocation5], 0
    // Predicated region
    $region2: #{tpu_custom_call.1} parent=1 // pred_check
      _
    $region3: #{tpu_custom_call.1} parent=1 // pred_check_branch
      %11 = sbr.rel (0) target = $region5
    $region4: #{tpu_custom_call.1} parent=1 // pred_region
      %s12 = sadd.s32 0, 0
      %s13 = smul.u32 2, %s12
      %s15 = ssub.s32 256, 256
      %16 = vsyncadd [#allocation4], %s15
      %s17 = smul.addr %s13, 128
      %s18 = scalar_lea.hbm %s0, %s17
      %s19 = sshll.u32 [#allocation3], 4
      %s20 = int_to_ptr.vmem [resolvable:$true] %s19
      %25 = dma.hbm_to_vmem [thread:$0]  %s18, 256, %s20, [#allocation4], 128, 128, 8
    $region5: #{tpu_custom_call.1} parent=1 // pred_fallthru
      _
    // Predicated region
    $region6: #{tpu_custom_call.1} parent=1 // pred_check
      _
    $region7: #{tpu_custom_call.1} parent=1 // pred_check_branch
      %27 = sbr.rel (0) target = $region9
    $region8: #{tpu_custom_call.1} parent=1 // pred_region
      %s28 = sadd.s32 0, 0
      %s29 = smul.u32 2, %s28
      %s31 = ssub.s32 256, 256
      %32 = vsyncadd [#allocation7], %s31
      %s33 = smul.addr %s29, 128
      %s34 = scalar_lea.hbm %s1, %s33
      %s35 = sshll.u32 [#allocation6], 4
      %s36 = int_to_ptr.vmem [resolvable:$true] %s35
      %41 = dma.hbm_to_vmem [thread:$0]  %s34, 256, %s36, [#allocation7], 128, 128, 8
    $region9: #{tpu_custom_call.1} parent=1 // pred_fallthru
      _
    // Predicated region
    $region10: #{tpu_custom_call.1} parent=1 // pred_check
      _
    $region11: #{tpu_custom_call.1} parent=1 // pred_check_branch
      %43 = sbr.rel (0) target = $region13
    $region12: #{tpu_custom_call.1} parent=1 // pred_region
      %44 = dma.done [#allocation4], 256
    $region13: #{tpu_custom_call.1} parent=1 // pred_fallthru
      _
    // Predicated region
    $region14: #{tpu_custom_call.1} parent=1 // pred_check
      _
    $region15: #{tpu_custom_call.1} parent=1 // pred_check_branch
      %46 = sbr.rel (0) target = $region17
    $region16: #{tpu_custom_call.1} parent=1 // pred_region
      %47 = dma.done [#allocation7], 256
    $region17: #{tpu_custom_call.1} parent=1 // pred_fallthru
      _
    %s48 = sadd.s32 0, 0
    %s49 = smul.u32 2, %s48
    %s50 = sadd.s32 0, 0
    %s51 = smul.u32 2, %s50
    %p52 = scmp.eq.s32.totalorder 0, 0
    // Predicated region
    $region18: #{tpu_custom_call.1} parent=1 // pred_check
      %p53 = pneg %p52
    $region19: #{tpu_custom_call.1} parent=1 // pred_check_branch
      %55 = sbr.rel (%p53) target = $region21
    $region20: #{tpu_custom_call.1} parent=1 // pred_region
      %56 = vst [vmem:[#allocation2] sm:$0xff] 0.0
    $region21: #{tpu_custom_call.1} parent=1 // pred_fallthru
      _
    %v57 = vld [vmem:[#allocation3] sm:$0xff]
    %v58 = vld [vmem:[#allocation3 + $0x8] sm:$0xff]
    %v59 = vld [vmem:[#allocation6] sm:$0xff]
    %v60 = vld [vmem:[#allocation6 + $0x8] sm:$0xff]
    %v61 = vsub.f32 %v57, %v59
    %v62 = vsub.f32 %v58, %v60
    %v63 = vmul.f32 %v61, %v61
    %v64 = vmul.f32 %v62, %v62
    %v65 = vld [vmem:[#allocation2] sm:$0xff]
    %v66 = vadd.f32 %v63, %v64
    %v67 = vadd.f32 %v65, %v66
    %68 = vst [vmem:[#allocation2] sm:$0xff] %v67
    // Predicated region
    $region22: #{tpu_custom_call.1} parent=1 // pred_check
      %p69 = pneg %p52
    $region23: #{tpu_custom_call.1} parent=1 // pred_check_branch
      %71 = sbr.rel (%p69) target = $region25
    $region24: #{tpu_custom_call.1} parent=1 // pred_region
      %v72 = vld [vmem:[#allocation2] sm:$0xff]
      %73 = vadd.xlane.f32.xlu0 %v72
      %v74 = vpop.xlane.xlu0 %73
      %v75 = vrot.slane %v74, 4
      %v76 = vadd.f32 %v74, %v75
      %v77 = vrot.slane %v76, 2
      %v78 = vadd.f32 %v76, %v77
      %v79 = vrot.slane %v78, 1
      %v80 = vadd.f32 %v78, %v79
      %s81 = vtos %v80
      %v82 = vstv %s81
      %vm83 = vcmask 0
      %84 = vst.msk [vmem:[#allocation8] sm:$0x1] %vm83, %v82
    $region25: #{tpu_custom_call.1} parent=1 // pred_fallthru
      _
    // Predicated region
    $region26: #{tpu_custom_call.1} parent=1 // pred_check
      _
    $region27: #{tpu_custom_call.1} parent=1 // pred_check_branch
      %86 = sbr.rel (0) target = $region29
    $region28: #{tpu_custom_call.1} parent=1 // pred_region
      %s88 = ssub.s32 16, 16
      %89 = vsyncadd [#allocation5], %s88
      %s91 = sshll.u32 [#allocation8], 4
      %s92 = int_to_ptr.vmem [resolvable:$true] %s91
      %94 = dma.vmem_to_hbm [thread:$0]  %s92, 16, %s2, [#allocation5]
    $region29: #{tpu_custom_call.1} parent=1 // pred_fallthru
      _
    // Predicated region
    $region30: #{tpu_custom_call.1} parent=1 // pred_check
      _
    $region31: #{tpu_custom_call.1} parent=1 // pred_check_branch
      %96 = sbr.rel (0) target = $region33
    $region32: #{tpu_custom_call.1} parent=1 // pred_region
      %97 = dma.done [#allocation5], 16
    $region33: #{tpu_custom_call.1} parent=1 // pred_fallthru
      _
    %98 = vsyncpa [#allocation4], 1
    %99 = vsyncpa [#allocation7], 1
    %100 = vsyncpa [#allocation5], 1

</llo_original>
